<compile_context>
chip_gen: v7x
topology: tpu7x:2x2x1
jax: 0.10.0
libtpu: 0.0.40
codegen_flags: <defaults>
</compile_context>

<pallas_src>
import functools

import jax
import jax.numpy as jnp
from jax import lax
from jax.experimental import pallas as pl
from jax.experimental.pallas import tpu as pltpu


def _self_output_kernel(h_ref, x_ref, w_ref, b_ref, g_ref, beta_ref, o_ref, *, eps):
    # h_ref    : (tm, H)  hidden_states tile (native dtype; cast to the MXU dtype below)
    # x_ref    : (tm, H)  residual (input_tensor) tile
    # w_ref    : (H, H)   dense weight, already (in, out) layout + bf16, resident across the grid
    # b_ref    : (1, H)   dense bias      (f32)
    # g_ref    : (1, H)   LayerNorm gamma (f32)
    # beta_ref : (1, H)   LayerNorm beta  (f32)

    # dense: y = h @ W  -- canonical MXU contraction (weight pre-transposed in the wrapper),
    # bf16 operands, f32 accumulation.
    h = h_ref[...].astype(w_ref.dtype)
    y = jnp.dot(h, w_ref[...], preferred_element_type=jnp.float32)

    # dropout: eval-mode identity.
    # TODO(synk): training-mode dropout would use pltpu.prng_seed / pltpu.prng_random_bits.

    # bias + residual in f32
    z = y + b_ref[...] + x_ref[...].astype(jnp.float32)

    # LayerNorm over the hidden axis.  Centered (two-pass) variance E[(z-mean)^2]: avoids the
    # catastrophic cancellation of E[z^2]-E[z]^2 when |mean| >> std (matches PyTorch LayerNorm).
    inv_h = 1.0 / z.shape[-1]
    mean = jnp.sum(z, axis=-1, keepdims=True) * inv_h
    zc = z - mean
    var = jnp.sum(zc * zc, axis=-1, keepdims=True) * inv_h
    norm = zc * lax.rsqrt(var + eps)
    out = norm * g_ref[...] + beta_ref[...]

    o_ref[...] = out.astype(o_ref.dtype)


def _round_up(x, m):
    return ((x + m - 1) // m) * m


def _sublane_min(dtype):
    # Minimum second-to-last block dim for a dtype: 8 (4-byte), 16 (2-byte), 32 (1-byte).
    return max(8, 32 // jnp.dtype(dtype).itemsize)


def bert_self_output(hidden_states, input_tensor, weight, bias, gamma, beta,
                     *, eps=1e-12, row_tile=512, mxu_dtype=jnp.bfloat16):
    """hidden_states, input_tensor: [..., H]. weight: [H_out, H_in] (PyTorch nn.Linear layout)."""
    orig_shape = hidden_states.shape
    H = orig_shape[-1]
    h2d = hidden_states.reshape(-1, H)
    x2d = input_tensor.reshape(-1, H)
    M = h2d.shape[0]
    out_dtype = hidden_states.dtype

    # One-time wrapper transpose to (in, out) so the kernel runs the canonical contraction on the
    # MXU fast weight-push path; the bf16 cast halves the resident weight (VMEM + HBM read).
    # TODO(synk): for H > ~2048 the resident (H, H) weight no longer fits v7x VMEM -- add a K grid
    # axis ("arbitrary") with an f32 VMEM accumulator instead of keeping the whole weight resident.
    w_in_out = weight.T
    if mxu_dtype is not None and w_in_out.dtype != mxu_dtype:
        w_in_out = w_in_out.astype(mxu_dtype)

    b2d = bias.reshape(1, H).astype(jnp.float32)
    g2d = gamma.reshape(1, H).astype(jnp.float32)
    beta2d = beta.reshape(1, H).astype(jnp.float32)

    # Row tile: as large as row_tile allows, rounded to the strictest sublane minimum among the
    # dtypes involved (8 f32 / 16 bf16 / 32 int8).  No host-side padding: grid = cdiv(M, tm) and
    # Pallas masks the partial edge block.  LayerNorm is per-row, so rows past M never contaminate
    # valid rows and are never written back (their in-flight values may be garbage and are discarded).
    sub = max(_sublane_min(h2d.dtype), _sublane_min(x2d.dtype),
              _sublane_min(out_dtype), _sublane_min(w_in_out.dtype))
    tm = _round_up(min(row_tile, M), sub)
    grid = (pl.cdiv(M, tm),)

    # VMEM budget: double-buffered h/x/out tiles + single-buffered resident weight + params,
    # plus headroom, capped well below v7x's 64 MiB per-TensorCore physical VMEM.
    isz = lambda dt: jnp.dtype(dt).itemsize
    tile_bytes = tm * H * 2 * (isz(h2d.dtype) + isz(x2d.dtype) + isz(out_dtype))
    need = tile_bytes + H * H * isz(w_in_out.dtype) + 3 * H * 4
    vmem_limit = int(min(max(need * 3 // 2 + (4 << 20), 16 << 20), 48 << 20))

    resident = pl.Buffered(1)  # constant index map: no prefetch needed, skip the second buffer copy
    kernel = functools.partial(_self_output_kernel, eps=eps)

    out = pl.pallas_call(
        kernel,
        out_shape=jax.ShapeDtypeStruct((M, H), out_dtype),
        grid_spec=pltpu.PrefetchScalarGridSpec(
            num_scalar_prefetch=0,
            grid=grid,
            in_specs=[
                pl.BlockSpec((tm, H), lambda i: (i, 0)),                          # hidden_states tile
                pl.BlockSpec((tm, H), lambda i: (i, 0)),                          # residual tile
                pl.BlockSpec((H, H), lambda i: (0, 0), pipeline_mode=resident),   # weight (in, out)
                pl.BlockSpec((1, H), lambda i: (0, 0), pipeline_mode=resident),   # bias
                pl.BlockSpec((1, H), lambda i: (0, 0), pipeline_mode=resident),   # gamma
                pl.BlockSpec((1, H), lambda i: (0, 0), pipeline_mode=resident),   # beta
            ],
            out_specs=pl.BlockSpec((tm, H), lambda i: (i, 0)),
        ),
        compiler_params=pltpu.CompilerParams(
            dimension_semantics=("parallel",),   # row axis shards across the 2 TCs on v7x megacore
            vmem_limit_bytes=vmem_limit,
        ),
    )(h2d, x2d, w_in_out, b2d, g2d, beta2d)

    return out.reshape(orig_shape)


def _reference(hidden_states, input_tensor, weight, bias, gamma, beta, eps=1e-12):
    y = hidden_states @ weight.T + bias
    z = y + input_tensor
    mean = jnp.mean(z, axis=-1, keepdims=True)
    var = jnp.mean((z - mean) ** 2, axis=-1, keepdims=True)
    return (z - mean) / jnp.sqrt(var + eps) * gamma + beta


if __name__ == "__main__":
    # small BERT-like config: batch=2, seq=8, hidden=32
    B, S, H = 2, 8, 32
    eps = 1e-12

    key = jax.random.PRNGKey(0)
    k_h, k_x, k_w, k_b = jax.random.split(key, 4)

    hidden_states = jax.random.normal(k_h, (B, S, H), dtype=jnp.float32)
    input_tensor = jax.random.normal(k_x, (B, S, H), dtype=jnp.float32)

    # nn.Linear-style init: U(-1/sqrt(H), 1/sqrt(H)); weight is (out, in)
    bound = 1.0 / (H ** 0.5)
    weight = jax.random.uniform(k_w, (H, H), minval=-bound, maxval=bound, dtype=jnp.float32)
    bias = jax.random.uniform(k_b, (H,), minval=-bound, maxval=bound, dtype=jnp.float32)
    # LayerNorm params: gamma=1, beta=0 (PyTorch default init)
    gamma = jnp.ones((H,), dtype=jnp.float32)
    beta = jnp.zeros((H,), dtype=jnp.float32)

    out = bert_self_output(hidden_states, input_tensor, weight, bias, gamma, beta, eps=eps)
    out = jax.block_until_ready(out)
    assert out.shape == (B, S, H)

    # The kernel feeds the MXU in bf16 (f32 accumulation): compare tightly against a reference with
    # the same matmul operand rounding, and loosely against the pure-f32 reference.
    ref_bf16 = _reference(hidden_states.astype(jnp.bfloat16).astype(jnp.float32), input_tensor,
                          weight.astype(jnp.bfloat16).astype(jnp.float32), bias, gamma, beta, eps=eps)
    ref_f32 = _reference(hidden_states, input_tensor, weight, bias, gamma, beta, eps=eps)
    assert jnp.allclose(out, ref_bf16, atol=2e-3, rtol=2e-3), "mismatch vs bf16-matched reference"
    assert jnp.allclose(out, ref_f32, atol=5e-2, rtol=5e-2), "mismatch vs f32 reference"

    print("KERNEL_OK")
</pallas_src>

<mosaic_0001>
module attributes {stable_mosaic.version = 11 : i64} {
  func.func @_self_output_kernel(%arg0: i32, %arg1: memref<16x32xf32, #tpu.memory_space<vmem>>, %arg2: memref<16x32xf32, #tpu.memory_space<vmem>>, %arg3: memref<32x32xbf16, #tpu.memory_space<vmem>>, %arg4: memref<1x32xf32, #tpu.memory_space<vmem>>, %arg5: memref<1x32xf32, #tpu.memory_space<vmem>>, %arg6: memref<1x32xf32, #tpu.memory_space<vmem>>, %arg7: memref<16x32xf32, #tpu.memory_space<vmem>>) attributes {dimension_semantics = [#tpu.dimension_semantics<parallel>], iteration_bounds = array<i64: 1>, scalar_prefetch = 0 : i64, scratch_operands = 0 : i64, tpu.core_type = #tpu.core_type<tc>, window_params = [{transform_indices = @transform_0, window_bounds = array<i64: 16, 32>}, {transform_indices = @transform_1, window_bounds = array<i64: 16, 32>}, {pipeline_mode = #tpu.pipeline_mode<synchronous>, transform_indices = @transform_2, window_bounds = array<i64: 32, 32>}, {pipeline_mode = #tpu.pipeline_mode<synchronous>, transform_indices = @transform_3, window_bounds = array<i64: 1, 32>}, {pipeline_mode = #tpu.pipeline_mode<synchronous>, transform_indices = @transform_4, window_bounds = array<i64: 1, 32>}, {pipeline_mode = #tpu.pipeline_mode<synchronous>, transform_indices = @transform_5, window_bounds = array<i64: 1, 32>}, {transform_indices = @transform_6, window_bounds = array<i64: 16, 32>}]} {
    %c0 = arith.constant 0 : index
    %c0_0 = arith.constant 0 : index
    %0 = vector.load %arg1[%c0, %c0_0] : memref<16x32xf32, #tpu.memory_space<vmem>>, vector<16x32xf32>
    %1 = arith.truncf %0 : vector<16x32xf32> to vector<16x32xbf16>
    %c0_1 = arith.constant 0 : index
    %c0_2 = arith.constant 0 : index
    %2 = vector.load %arg3[%c0_1, %c0_2] : memref<32x32xbf16, #tpu.memory_space<vmem>>, vector<32x32xbf16>
    %cst = arith.constant dense<0.000000e+00> : vector<16x32xf32>
    %3 = tpu.matmul %1, %2, %cst {dimension_numbers = #tpu.dot_dimension_numbers<[1], [0], [0], [1], [0, 0, 1, 1], [], []>} : vector<16x32xbf16>, vector<32x32xbf16>, vector<16x32xf32> -> vector<16x32xf32>
    %c0_3 = arith.constant 0 : index
    %c0_4 = arith.constant 0 : index
    %4 = vector.load %arg4[%c0_3, %c0_4] : memref<1x32xf32, #tpu.memory_space<vmem>>, vector<1x32xf32>
    %5 = vector.broadcast %4 : vector<1x32xf32> to vector<16x32xf32>
    %6 = arith.addf %3, %5 : vector<16x32xf32>
    %c0_5 = arith.constant 0 : index
    %c0_6 = arith.constant 0 : index
    %7 = vector.load %arg2[%c0_5, %c0_6] : memref<16x32xf32, #tpu.memory_space<vmem>>, vector<16x32xf32>
    %8 = arith.addf %6, %7 : vector<16x32xf32>
    %cst_7 = arith.constant dense<0.000000e+00> : vector<16xf32>
    %9 = vector.multi_reduction <add>, %8, %cst_7 [1] : vector<16x32xf32> to vector<16xf32>
    %10 = vector.shape_cast %9 : vector<16xf32> to vector<16x1xf32>
    %cst_8 = arith.constant 3.125000e-02 : f32
    %11 = vector.broadcast %cst_8 : f32 to vector<16x1xf32>
    %12 = arith.mulf %10, %11 : vector<16x1xf32>
    %13 = vector.broadcast %12 : vector<16x1xf32> to vector<16x32xf32>
    %14 = arith.subf %8, %13 : vector<16x32xf32>
    %15 = arith.mulf %14, %14 : vector<16x32xf32>
    %cst_9 = arith.constant dense<0.000000e+00> : vector<16xf32>
    %16 = vector.multi_reduction <add>, %15, %cst_9 [1] : vector<16x32xf32> to vector<16xf32>
    %17 = vector.shape_cast %16 : vector<16xf32> to vector<16x1xf32>
    %cst_10 = arith.constant 3.125000e-02 : f32
    %18 = vector.broadcast %cst_10 : f32 to vector<16x1xf32>
    %19 = arith.mulf %17, %18 : vector<16x1xf32>
    %cst_11 = arith.constant 9.99999996E-13 : f32
    %20 = vector.broadcast %cst_11 : f32 to vector<16x1xf32>
    %21 = arith.addf %19, %20 : vector<16x1xf32>
    %22 = math.rsqrt %21 : vector<16x1xf32>
    %23 = vector.broadcast %22 : vector<16x1xf32> to vector<16x32xf32>
    %24 = arith.mulf %14, %23 : vector<16x32xf32>
    %c0_12 = arith.constant 0 : index
    %c0_13 = arith.constant 0 : index
    %25 = vector.load %arg5[%c0_12, %c0_13] : memref<1x32xf32, #tpu.memory_space<vmem>>, vector<1x32xf32>
    %26 = vector.broadcast %25 : vector<1x32xf32> to vector<16x32xf32>
    %27 = arith.mulf %24, %26 : vector<16x32xf32>
    %c0_14 = arith.constant 0 : index
    %c0_15 = arith.constant 0 : index
    %28 = vector.load %arg6[%c0_14, %c0_15] : memref<1x32xf32, #tpu.memory_space<vmem>>, vector<1x32xf32>
    %29 = vector.broadcast %28 : vector<1x32xf32> to vector<16x32xf32>
    %30 = arith.addf %27, %29 : vector<16x32xf32>
    %c0_16 = arith.constant 0 : index
    %c0_17 = arith.constant 0 : index
    %31 = vector.load %arg7[%c0_16, %c0_17] : memref<16x32xf32, #tpu.memory_space<vmem>>, vector<16x32xf32>
    tpu.vector_store %arg7[%c0_16, %c0_17], %30 {strides = array<i32>} : memref<16x32xf32, #tpu.memory_space<vmem>>, vector<16x32xf32>,
    return
  }
  func.func @transform_0(%arg0: i32) -> (i32, i32) {
    %c0_i32 = arith.constant 0 : i32
    %c0_i32_0 = arith.constant 0 : i32
    return %arg0, %c0_i32 : i32, i32
  }
  func.func @transform_1(%arg0: i32) -> (i32, i32) {
    %c0_i32 = arith.constant 0 : i32
    %c0_i32_0 = arith.constant 0 : i32
    return %arg0, %c0_i32 : i32, i32
  }
  func.func @transform_2(%arg0: i32) -> (i32, i32) {
    %c0_i32 = arith.constant 0 : i32
    %c0_i32_0 = arith.constant 0 : i32
    %c0_i32_1 = arith.constant 0 : i32
    return %c0_i32, %c0_i32_0 : i32, i32
  }
  func.func @transform_3(%arg0: i32) -> (i32, i32) {
    %c0_i32 = arith.constant 0 : i32
    %c0_i32_0 = arith.constant 0 : i32
    %c0_i32_1 = arith.constant 0 : i32
    return %c0_i32, %c0_i32_0 : i32, i32
  }
  func.func @transform_4(%arg0: i32) -> (i32, i32) {
    %c0_i32 = arith.constant 0 : i32
    %c0_i32_0 = arith.constant 0 : i32
    %c0_i32_1 = arith.constant 0 : i32
    return %c0_i32, %c0_i32_0 : i32, i32
  }
  func.func @transform_5(%arg0: i32) -> (i32, i32) {
    %c0_i32 = arith.constant 0 : i32
    %c0_i32_0 = arith.constant 0 : i32
    %c0_i32_1 = arith.constant 0 : i32
    return %c0_i32, %c0_i32_0 : i32, i32
  }
  func.func @transform_6(%arg0: i32) -> (i32, i32) {
    %c0_i32 = arith.constant 0 : i32
    %c0_i32_0 = arith.constant 0 : i32
    return %arg0, %c0_i32 : i32, i32
  }
}

</mosaic_0001>

<llo_original>
// kernel: tpu_custom_call.1
$region0: #{tpu_custom_call.1}
  #allocation0 [shape = 'u32[]', space=smem, size = 0x4, offset = 0x4, fixed_abs, tag = 'smem constant byte address 0x4 - core index']
  #allocation1 [shape = 'u32[144,128]{1,0:T(1,128)}', space=vmem, size = 0x12000, scoped, tag = 'internal scratch']
  %s0 = inlined_call_operand.hbm [shape: f32[16,32], index: 0, kind: input, shape index: {}]
  %s1 = inlined_call_operand.hbm [shape: f32[16,32], index: 1, kind: input, shape index: {}]
  %s2 = inlined_call_operand.hbm [shape: bf16[32,32], index: 2, kind: input, shape index: {}]
  %s3 = inlined_call_operand.vmem [shape: f32[1,32], index: 3, kind: input, shape index: {}]
  %s4 = inlined_call_operand.vmem [shape: f32[1,32], index: 4, kind: input, shape index: {}]
  %s5 = inlined_call_operand.vmem [shape: f32[1,32], index: 5, kind: input, shape index: {}]
  %s6 = inlined_call_operand.hbm [shape: f32[16,32], index: 6, kind: output, shape index: {}]
  %s7 = sld [smem:[#allocation0]]
  $region46: #{tpu_custom_call.1} parent=0
    _
  %s9 = ssub.s32 1, %s7
  %s10 = scalar_select 0, %s9, %s7
  $region1: #{tpu_custom_call.1} parent=0
    #allocation2 [shape = 'u8[8192]{0}', space=vmem, size = 0x2000, scoped, tag = 'input window, operand 0, single buffered']
    #allocation3 [shape = 's32[1]{0}', space=sflag, size = 0x4, scoped, tag = 'scoped memory for tpu_custom_call.1']
    #allocation4 [shape = 's32[1]{0}', space=sflag, size = 0x4, scoped, tag = 'scoped memory for tpu_custom_call.1']
    #allocation5 [shape = 'u8[8192]{0}', space=vmem, size = 0x2000, scoped, tag = 'input window, operand 1, single buffered']
    #allocation6 [shape = 's32[1]{0}', space=sflag, size = 0x4, scoped, tag = 'scoped memory for tpu_custom_call.1']
    #allocation7 [shape = 'u8[8192]{0}', space=vmem, size = 0x2000, scoped, tag = 'input window, operand 2, single buffered']
    #allocation8 [shape = 'u8[8192]{0}', space=vmem, size = 0x2000, scoped, tag = 'output window, operand 0, single buffered']
    %11 = vsyncpa [#allocation3], 0
    %12 = vsyncpa [#allocation6], 0
    %13 = vsyncpa [#allocation4], 0
    // Predicated region
    $region2: #{tpu_custom_call.1} parent=1 // pred_check
      _
    $region3: #{tpu_custom_call.1} parent=1 // pred_check_branch
      %15 = sbr.rel (0) target = $region5
    $region4: #{tpu_custom_call.1} parent=1 // pred_region
      %s17 = ssub.s32 256, 256
      %18 = vsyncadd [#allocation3], %s17
      %s19 = sshll.u32 [#allocation2], 4
      %s20 = int_to_ptr.vmem [resolvable:$true] %s19
      %25 = dma.hbm_to_vmem [thread:$0]  %s0, 256, %s20, [#allocation3], 128, 128, 8
    $region5: #{tpu_custom_call.1} parent=1 // pred_fallthru
      _
    // Predicated region
    $region6: #{tpu_custom_call.1} parent=1 // pred_check
      _
    $region7: #{tpu_custom_call.1} parent=1 // pred_check_branch
      %27 = sbr.rel (0) target = $region9
    $region8: #{tpu_custom_call.1} parent=1 // pred_region
      %s29 = ssub.s32 256, 256
      %30 = vsyncadd [#allocation6], %s29
      %s31 = sshll.u32 [#allocation5], 4
      %s32 = int_to_ptr.vmem [resolvable:$true] %s31
      %37 = dma.hbm_to_vmem [thread:$0]  %s1, 256, %s32, [#allocation6], 128, 128, 8
    $region9: #{tpu_custom_call.1} parent=1 // pred_fallthru
      _
    // Predicated region
    $region10: #{tpu_custom_call.1} parent=1 // pred_check
      _
    $region11: #{tpu_custom_call.1} parent=1 // pred_check_branch
      %39 = sbr.rel (0) target = $region13
    $region12: #{tpu_custom_call.1} parent=1 // pred_region
      %s41 = ssub.s32 256, 256
      %42 = vsyncadd [#allocation6], %s41
      %s43 = sshll.u32 [#allocation7], 4
      %s44 = int_to_ptr.vmem [resolvable:$true] %s43
      %49 = dma.hbm_to_vmem [thread:$0]  %s2, 256, %s44, [#allocation6], 64, 64, 4
    $region13: #{tpu_custom_call.1} parent=1 // pred_fallthru
      _
    // Predicated region
    $region14: #{tpu_custom_call.1} parent=1 // pred_check
      _
    $region15: #{tpu_custom_call.1} parent=1 // pred_check_branch
      %51 = sbr.rel (0) target = $region17
    $region16: #{tpu_custom_call.1} parent=1 // pred_region
      _
    $region17: #{tpu_custom_call.1} parent=1 // pred_fallthru
      _
    // Predicated region
    $region18: #{tpu_custom_call.1} parent=1 // pred_check
      _
    $region19: #{tpu_custom_call.1} parent=1 // pred_check_branch
      %53 = sbr.rel (0) target = $region21
    $region20: #{tpu_custom_call.1} parent=1 // pred_region
      _
    $region21: #{tpu_custom_call.1} parent=1 // pred_fallthru
      _
    // Predicated region
    $region22: #{tpu_custom_call.1} parent=1 // pred_check
      _
    $region23: #{tpu_custom_call.1} parent=1 // pred_check_branch
      %55 = sbr.rel (0) target = $region25
    $region24: #{tpu_custom_call.1} parent=1 // pred_region
      _
    $region25: #{tpu_custom_call.1} parent=1 // pred_fallthru
      _
    // Predicated region
    $region26: #{tpu_custom_call.1} parent=1 // pred_check
      _
    $region27: #{tpu_custom_call.1} parent=1 // pred_check_branch
      %57 = sbr.rel (0) target = $region29
    $region28: #{tpu_custom_call.1} parent=1 // pred_region
      %58 = dma.done [#allocation3], 256
    $region29: #{tpu_custom_call.1} parent=1 // pred_fallthru
      _
    // Predicated region
    $region30: #{tpu_custom_call.1} parent=1 // pred_check
      _
    $region31: #{tpu_custom_call.1} parent=1 // pred_check_branch
      %60 = sbr.rel (0) target = $region33
    $region32: #{tpu_custom_call.1} parent=1 // pred_region
      %61 = dma.done [#allocation6], 256
    $region33: #{tpu_custom_call.1} parent=1 // pred_fallthru
      _
    // Predicated region
    $region34: #{tpu_custom_call.1} parent=1 // pred_check
      _
    $region35: #{tpu_custom_call.1} parent=1 // pred_check_branch
      %63 = sbr.rel (0) target = $region37
    $region36: #{tpu_custom_call.1} parent=1 // pred_region
      %64 = dma.done [#allocation6], 256
    $region37: #{tpu_custom_call.1} parent=1 // pred_fallthru
      _
    %v66 = vld [vmem:[#allocation2] sm:$0xff]
    %v67 = vld [vmem:[#allocation2 + $0x8] sm:$0xff]
    %v68 = vpack.c.bf16 %v67, %v66
    %v69 = vld [vmem:[#allocation7] sm:$0xf]
    %v70 = vld [vmem:[#allocation7 + $0x4] sm:$0xf]
    %v71 = vld [vmem:[#allocation7 + $0x8] sm:$0xf]
    %v72 = vld [vmem:[#allocation7 + $0xc] sm:$0xf]
    %v73 = vld [vmem:[%s3] sm:$0x1]
    %v75 = vlaneseq
    %v76 = vshrl.u32 %v75, 7
    %v77 = vsub.s32 0, %v76
    %v78 = vrot.slane %v73, %v77
    %v84 = vunpack.c.l.b16 %v69
    %v85 = vunpack.c.l.b16 %v70
    %v86 = vunpack.c.l.b16 %v71
    %v87 = vunpack.c.l.b16 %v72
    %v88 = vpack.c.b16 %v85, %v84
    %v89 = vpack.c.b16 %v87, %v86
    %vm92 = vcmask 261120
    %v94 = vsel %vm92, %v68, 0
    %96 = vmatprep.subr.bf16.mxu0 0
    %97 = vmatpush1.bf16.msra.mxu0 %v88
    %98 = vmatprep.subr.bf16.mxu0 0
    %99 = vmatpush1.bf16.msra.mxu0 %v89
    %100 = vmatprep.subr.bf16.mxu0 0
    %101 = vmatpush1.bf16.msra.mxu0 0
    %102 = vmatprep.subr.bf16.mxu0 0
    %103 = vmatpush1.bf16.msra.mxu0 0
    %104 = vmatprep.subr.bf16.mxu0 0
    %105 = vmatpush1.bf16.msra.mxu0 0
    %106 = vmatprep.subr.bf16.mxu0 0
    %107 = vmatpush1.bf16.msra.mxu0 0
    %108 = vmatprep.subr.bf16.mxu0 0
    %109 = vmatpush1.bf16.msra.mxu0 0
    %110 = vmatprep.subr.bf16.mxu0 0
    %111 = vmatpush1.bf16.msra.mxu0 0
    %112 = vmatprep.subr.bf16.mxu0 0
    %113 = vmatpush1.bf16.msra.mxu0 0
    %114 = vmatprep.subr.bf16.mxu0 0
    %115 = vmatpush1.bf16.msra.mxu0 0
    %116 = vmatprep.subr.bf16.mxu0 0
    %117 = vmatpush1.bf16.msra.mxu0 0
    %118 = vmatprep.subr.bf16.mxu0 0
    %119 = vmatpush1.bf16.msra.mxu0 0
    %120 = vmatprep.subr.bf16.mxu0 0
    %121 = vmatpush1.bf16.msra.mxu0 0
    %122 = vmatprep.subr.bf16.mxu0 0
    %123 = vmatpush1.bf16.msra.mxu0 0
    %124 = vmatprep.subr.bf16.mxu0 0
    %125 = vmatpush1.bf16.msra.mxu0 0
    %126 = vmatprep.subr.bf16.mxu0 0
    %127 = vmatpush1.bf16.msra.mxu0 0
    %128 = vmatprep.mubr.bf16.mxu0 0
    %129 = vmatmul.mubr.bf16.gmra.mrb[0].mxu0 %v94
    %v130 = vpop.f32.mrb[0].mxu0
    %v131 = vadd.f32 %v78, %v130
    %v132 = vpop.f32.mrb[0].mxu0
    %v133 = vpop.f32.mrb[0].mxu0
    %v134 = vadd.f32 %v78, %v133
    %v135 = vpop.f32.mrb[0].mxu0
    %136 = vdwg.mxu0
    %v137 = vld [vmem:[#allocation5] sm:$0xff]
    %v138 = vld [vmem:[#allocation5 + $0x8] sm:$0xff]
    %v139 = vadd.f32 %v131, %v137
    %v140 = vadd.f32 %v134, %v138
    %v141 = vsel %vm92, %v139, 0.0
    %142 = vadd.xlane.f32.xlu0 %v141
    %v143 = vpop.xlane.xlu0 %142
    %v144 = vsel %vm92, %v140, 0.0
    %145 = vadd.xlane.f32.xlu0 %v144
    %v146 = vpop.xlane.xlu0 %145
    %v147 = vmul.f32 %v143, 0.03125
    %v148 = vmul.f32 %v146, 0.03125
    %v149 = vsub.f32 %v139, %v147
    %v150 = vsub.f32 %v140, %v148
    %v151 = vmul.f32 %v149, %v149
    %v152 = vmul.f32 %v150, %v150
    %v153 = vsel %vm92, %v151, 0.0
    %154 = vadd.xlane.f32.xlu0 %v153
    %v155 = vpop.xlane.xlu0 %154
    %v156 = vsel %vm92, %v152, 0.0
    %157 = vadd.xlane.f32.xlu0 %v156
    %v158 = vpop.xlane.xlu0 %157
    %v159 = vmul.f32 %v155, 0.03125
    %v160 = vmul.f32 %v158, 0.03125
    %v161 = vadd.f32 %v159, 1e-12
    %v162 = vadd.f32 %v160, 1e-12
    %v163 = vrsqrt.pop %v161
    %v164 = vrsqrt.pop %v162
    %v165 = vmul.f32 %v149, %v163
    %v166 = vmul.f32 %v150, %v164
    %v167 = vld [vmem:[%s4] sm:$0x1]
    %v169 = vlaneseq
    %v170 = vshrl.u32 %v169, 7
    %v171 = vsub.s32 0, %v170
    %v172 = vrot.slane %v167, %v171
    %v174 = vmul.f32 %v165, %v172
    %v175 = vmul.f32 %v166, %v172
    %v176 = vld [vmem:[%s5] sm:$0x1]
    %v178 = vlaneseq
    %v179 = vshrl.u32 %v178, 7
    %v180 = vsub.s32 0, %v179
    %v181 = vrot.slane %v176, %v180
    %v183 = vadd.f32 %v174, %v181
    %v184 = vadd.f32 %v175, %v181
    %185 = vst.msk [vmem:[#allocation8] sm:$0xff] %vm92, %v183
    %186 = vst.msk [vmem:[#allocation8 + $0x8] sm:$0xff] %vm92, %v184
    // Predicated region
    $region38: #{tpu_custom_call.1} parent=1 // pred_check
      _
    $region39: #{tpu_custom_call.1} parent=1 // pred_check_branch
      %188 = sbr.rel (0) target = $region41
    $region40: #{tpu_custom_call.1} parent=1 // pred_region
      %s190 = ssub.s32 256, 256
      %191 = vsyncadd [#allocation4], %s190
      %s192 = sshll.u32 [#allocation8], 4
      %s193 = int_to_ptr.vmem [resolvable:$true] %s192
      %198 = dma.vmem_to_hbm [thread:$0]  %s193, 256, %s6, [#allocation4], 128, 128, 8
    $region41: #{tpu_custom_call.1} parent=1 // pred_fallthru
      _
    // Predicated region
    $region42: #{tpu_custom_call.1} parent=1 // pred_check
      _
    $region43: #{tpu_custom_call.1} parent=1 // pred_check_branch
      %200 = sbr.rel (0) target = $region45
    $region44: #{tpu_custom_call.1} parent=1 // pred_region
      %201 = dma.done [#allocation4], 256
    $region45: #{tpu_custom_call.1} parent=1 // pred_fallthru
      _
    %202 = vsyncpa [#allocation3], 1
    %203 = vsyncpa [#allocation6], 1
    %204 = vsyncpa [#allocation4], 1

</llo_original>
